<compile_context>
chip_gen: v6e
topology: v6e:2x2x1
jax: 0.10.0
libtpu: 0.0.40
codegen_flags: <defaults>
</compile_context>

<pallas_src>
import functools

import jax
import jax.numpy as jnp
from jax import lax
from jax.experimental import pallas as pl
from jax.experimental.pallas import tpu as pltpu


def _round_up(v, m):
    return ((v + m - 1) // m) * m


def _etp_kernel(x_ref, y_ref, loss_ref, transp_ref, *,
                n_true, m_true, sinkhorn_alpha, stop_thr, max_iter, epsilon):
    f32 = jnp.float32
    x = x_ref[...].astype(f32)              # (Np, Dp), zero-padded
    y = y_ref[...].astype(f32)              # (Mp, Dp), zero-padded
    n_pad = x.shape[0]
    m_pad = y.shape[0]

    # Validity masks for padded rows/cols (2-D iota as required on TPU).
    row_valid = lax.broadcasted_iota(jnp.int32, (n_pad, 1), 0) < n_true   # (Np,1)
    col_valid = lax.broadcasted_iota(jnp.int32, (m_pad, 1), 0) < m_true   # (Mp,1)

    # Pairwise squared euclidean distance -> Gibbs kernel K.
    # (No clamp at 0: the PyTorch reference does not clamp either.)
    x2 = jnp.sum(x * x, axis=1, keepdims=True)                        # (Np,1)
    y2 = jnp.sum(y * y, axis=1, keepdims=True)                        # (Mp,1)
    xy = jnp.dot(x, y.T, preferred_element_type=f32)                  # (Np, Mp)
    cost = x2 + y2.T - 2.0 * xy
    # Zero out padded rows/cols so they contribute nothing to any matvec,
    # marginal, or the final transport plan / loss.  `cost` is dead after this
    # point (loss is computed in factored form), so it is not live across the
    # Sinkhorn loop.
    K = jnp.where(jnp.logical_and(row_valid, col_valid.T),
                  jnp.exp(-cost * sinkhorn_alpha), 0.0)               # (Np, Mp)

    # Uniform marginals over the *true* sizes (init_a_dist / init_b_dist None).
    a = jnp.where(row_valid, 1.0 / n_true, 0.0).astype(f32)           # (Np,1)
    b = jnp.where(col_valid, 1.0 / m_true, 0.0).astype(f32)           # (Mp,1)
    u0 = a                                                            # ones/N on valid rows
    v0 = jnp.zeros((m_pad, 1), f32)

    def sinkhorn_step(u, v):
        # v = b / (K^T u + eps), computed as (u^T K)^T -> only tiny vector
        # transposes, never a full K^T.
        ktu = jnp.dot(u.T, K, preferred_element_type=f32)             # (1, Mp)
        v = b / (ktu.T + epsilon)                                     # (Mp,1)
        kv = jnp.dot(K, v, preferred_element_type=f32)                # (Np,1)
        u = a / (kv + epsilon)
        return u, v

    def cond_fn(carry):
        _, _, err, cpt = carry
        return jnp.logical_and(err > stop_thr, cpt < max_iter)

    def outer_body(carry):
        u, v, err, cpt = carry
        # Reference refreshes err when cpt % 50 == 1, i.e. after step 1, 51,
        # 101, ...  -> first block is 1 step, later blocks are 50 steps,
        # capped at max_iter.  Error matvec runs once per block, not per step.
        block = jnp.where(cpt == 0, jnp.int32(1), jnp.int32(50))
        nsteps = jnp.minimum(block, max_iter - cpt)

        def inner(_, uv):
            return sinkhorn_step(*uv)

        u, v = lax.fori_loop(0, nsteps, inner, (u, v))
        cpt = cpt + nsteps

        # err = ||sum_j |v*(K^T u) - b|||_inf reduces to a single scalar.
        ktu = jnp.dot(u.T, K, preferred_element_type=f32)             # (1, Mp)
        bb = v * ktu.T                                                # (Mp,1)
        err = jnp.sum(jnp.abs(bb - b))
        return (u, v, err, cpt)

    u, v, _, _ = lax.while_loop(
        cond_fn, outer_body, (u0, v0, jnp.float32(1.0), jnp.int32(0)))

    transp = u * (K * v.T)                                            # (Np, Mp)
    transp_ref[...] = transp

    # loss = sum(transp * cost), factored so no (Np, Mp) cost slab is needed:
    #   sum(transp * (x2 + y2^T - 2 x y^T))
    #     = <x2, rowsum(transp)> + <y2, colsum(transp)> - 2*sum(x * (transp @ y))
    # Padded rows/cols of transp are exactly zero, so they contribute nothing.
    r = jnp.sum(transp, axis=1, keepdims=True)                        # (Np,1)
    c = jnp.sum(transp, axis=0, keepdims=True)                        # (1,Mp)
    ty = jnp.dot(transp, y, preferred_element_type=f32)               # (Np,Dp)
    loss_ref[0, 0] = (jnp.sum(x2 * r) + jnp.sum(y2.T * c)
                      - 2.0 * jnp.sum(x * ty))


def etp_forward(x, y, sinkhorn_alpha, OT_max_iter=5000, stopThr=0.005):
    """Pallas implementation of ETP.forward. Returns (loss_ETP, transp)."""
    n, d = x.shape
    m, d2 = y.shape
    assert d == d2, "feature dims must match"

    # Pad to TPU-friendly shapes: sublane (8) for n, lane (128) for m and d.
    n_pad = _round_up(max(n, 8), 8)
    m_pad = _round_up(max(m, 128), 128)
    d_pad = _round_up(max(d, 128), 128)

    xp = jnp.zeros((n_pad, d_pad), jnp.float32).at[:n, :d].set(
        x.astype(jnp.float32))
    yp = jnp.zeros((m_pad, d_pad), jnp.float32).at[:m, :d].set(
        y.astype(jnp.float32))

    kernel = functools.partial(
        _etp_kernel,
        n_true=n, m_true=m,
        sinkhorn_alpha=float(sinkhorn_alpha),
        stop_thr=float(stopThr),
        max_iter=int(OT_max_iter),
        epsilon=1e-16,
    )

    # VMEM budget: K + transp + small vectors + x/y slabs + headroom.
    slab = n_pad * m_pad * 4
    needed = 3 * slab + 2 * (n_pad + m_pad) * d_pad * 4 + (2 << 20)
    vmem_limit = int(min(100 * 2**20, max(32 * 2**20, needed)))

    loss, transp = pl.pallas_call(
        kernel,
        out_shape=(
            jax.ShapeDtypeStruct((1, 1), jnp.float32),         # loss_ETP
            jax.ShapeDtypeStruct((n_pad, m_pad), jnp.float32)  # transport plan
        ),
        in_specs=[
            pl.BlockSpec(memory_space=pltpu.MemorySpace.VMEM),
            pl.BlockSpec(memory_space=pltpu.MemorySpace.VMEM),
        ],
        out_specs=(
            pl.BlockSpec(memory_space=pltpu.MemorySpace.SMEM),
            pl.BlockSpec(memory_space=pltpu.MemorySpace.VMEM),
        ),
        compiler_params=pltpu.CompilerParams(vmem_limit_bytes=vmem_limit),
    )(xp, yp)
    return loss[0, 0], transp[:n, :m]


if __name__ == "__main__":
    key = jax.random.PRNGKey(0)
    kx, ky = jax.random.split(key)

    # Small synthetic shapes: N=8 source points, M=8 target points, D=32 feats.
    N, M, D = 8, 8, 32
    x = jax.random.normal(kx, (N, D), dtype=jnp.float32)
    y = jax.random.normal(ky, (M, D), dtype=jnp.float32)

    sinkhorn_alpha = 0.05  # module __init__ arg (modest so Sinkhorn converges)

    loss, transp = etp_forward(x, y, sinkhorn_alpha)
    jax.block_until_ready((loss, transp))
    print("KERNEL_OK")
</pallas_src>

<mosaic_0001>
module attributes {stable_mosaic.version = 11 : i64} {
  func.func @_etp_kernel(%arg0: memref<8x128xf32, #tpu.memory_space<vmem>>, %arg1: memref<128x128xf32, #tpu.memory_space<vmem>>, %arg2: memref<1x1xf32, #tpu.memory_space<smem>>, %arg3: memref<8x128xf32, #tpu.memory_space<vmem>>) attributes {dimension_semantics = [], scalar_prefetch = 0 : i64, scratch_operands = 0 : i64, tpu.core_type = #tpu.core_type<tc>} {
    %c0 = arith.constant 0 : index
    %c0_0 = arith.constant 0 : index
    %0 = vector.load %arg0[%c0, %c0_0] : memref<8x128xf32, #tpu.memory_space<vmem>>, vector<8x128xf32>
    %c0_1 = arith.constant 0 : index
    %c0_2 = arith.constant 0 : index
    %1 = vector.load %arg1[%c0_1, %c0_2] : memref<128x128xf32, #tpu.memory_space<vmem>>, vector<128x128xf32>
    %2 = tpu.iota {dimensions = array<i32: 0>} : vector<8x1xi32>
    %c8_i32 = arith.constant 8 : i32
    %3 = vector.broadcast %c8_i32 : i32 to vector<8x1xi32>
    %4 = arith.cmpi slt, %2, %3 : vector<8x1xi32>
    %5 = tpu.iota {dimensions = array<i32: 0>} : vector<128x1xi32>
    %c8_i32_3 = arith.constant 8 : i32
    %6 = vector.broadcast %c8_i32_3 : i32 to vector<128x1xi32>
    %7 = arith.cmpi slt, %5, %6 : vector<128x1xi32>
    %8 = arith.mulf %0, %0 : vector<8x128xf32>
    %cst = arith.constant dense<0.000000e+00> : vector<8xf32>
    %9 = vector.multi_reduction <add>, %8, %cst [1] : vector<8x128xf32> to vector<8xf32>
    %10 = vector.shape_cast %9 : vector<8xf32> to vector<8x1xf32>
    %11 = arith.mulf %1, %1 : vector<128x128xf32>
    %cst_4 = arith.constant dense<0.000000e+00> : vector<128xf32>
    %12 = vector.multi_reduction <add>, %11, %cst_4 [1] : vector<128x128xf32> to vector<128xf32>
    %13 = vector.shape_cast %12 : vector<128xf32> to vector<128x1xf32>
    %14 = tpu.transpose %1, [1, 0] : vector<128x128xf32> -> vector<128x128xf32>
    %cst_5 = arith.constant dense<0.000000e+00> : vector<8x128xf32>
    %15 = tpu.matmul %0, %14, %cst_5 {dimension_numbers = #tpu.dot_dimension_numbers<[1], [0], [0], [1], [0, 0, 1, 1], [], []>} : vector<8x128xf32>, vector<128x128xf32>, vector<8x128xf32> -> vector<8x128xf32>
    %16 = tpu.transpose %13, [1, 0] : vector<128x1xf32> -> vector<1x128xf32>
    %17 = vector.broadcast %10 : vector<8x1xf32> to vector<8x128xf32>
    %18 = vector.broadcast %16 : vector<1x128xf32> to vector<8x128xf32>
    %19 = arith.addf %17, %18 : vector<8x128xf32>
    %cst_6 = arith.constant 2.000000e+00 : f32
    %20 = vector.broadcast %cst_6 : f32 to vector<8x128xf32>
    %21 = arith.mulf %20, %15 : vector<8x128xf32>
    %22 = arith.subf %19, %21 : vector<8x128xf32>
    %23 = tpu.transpose %7, [1, 0] : vector<128x1xi1> -> vector<1x128xi1>
    %24 = vector.broadcast %4 : vector<8x1xi1> to vector<8x128xi1>
    %25 = vector.broadcast %23 : vector<1x128xi1> to vector<8x128xi1>
    %26 = arith.andi %24, %25 : vector<8x128xi1>
    %cst_7 = arith.constant 0.000000e+00 : f32
    %27 = vector.broadcast %cst_7 : f32 to vector<8x128xf32>
    %28 = arith.subf %27, %22 : vector<8x128xf32>
    %cst_8 = arith.constant 5.000000e-02 : f32
    %29 = vector.broadcast %cst_8 : f32 to vector<8x128xf32>
    %30 = arith.mulf %28, %29 : vector<8x128xf32>
    %31 = math.exp %30 : vector<8x128xf32>
    %cst_9 = arith.constant 0.000000e+00 : f32
    %32 = vector.broadcast %cst_9 : f32 to vector<8x128xf32>
    %33 = arith.select %26, %31, %32 : vector<8x128xi1>, vector<8x128xf32>
    %cst_10 = arith.constant 1.250000e-01 : f32
    %cst_11 = arith.constant 0.000000e+00 : f32
    %34 = vector.broadcast %cst_10 : f32 to vector<8x1xf32>
    %35 = vector.broadcast %cst_11 : f32 to vector<8x1xf32>
    %36 = arith.select %4, %34, %35 : vector<8x1xi1>, vector<8x1xf32>
    %cst_12 = arith.constant 1.250000e-01 : f32
    %cst_13 = arith.constant 0.000000e+00 : f32
    %37 = vector.broadcast %cst_12 : f32 to vector<128x1xf32>
    %38 = vector.broadcast %cst_13 : f32 to vector<128x1xf32>
    %39 = arith.select %7, %37, %38 : vector<128x1xi1>, vector<128x1xf32>
    %cst_14 = arith.constant 0.000000e+00 : f32
    %40 = vector.broadcast %cst_14 : f32 to vector<128x1xf32>
    %cst_15 = arith.constant 1.000000e+00 : f32
    %c0_i32 = arith.constant 0 : i32
    %41:4 = scf.while (%arg4 = %36, %arg5 = %40, %arg6 = %cst_15, %arg7 = %c0_i32) : (vector<8x1xf32>, vector<128x1xf32>, f32, i32) -> (vector<8x1xf32>, vector<128x1xf32>, f32, i32) {
      %cst_27 = arith.constant 5.000000e-03 : f32
      %73 = arith.cmpf ogt, %arg6, %cst_27 : f32
      %c5000_i32 = arith.constant 5000 : i32
      %74 = arith.cmpi slt, %arg7, %c5000_i32 : i32
      %75 = arith.andi %73, %74 : i1
      scf.condition(%75) %arg4, %arg5, %arg6, %arg7 : vector<8x1xf32>, vector<128x1xf32>, f32, i32
    } do {
    ^bb0(%arg4: vector<8x1xf32>, %arg5: vector<128x1xf32>, %arg6: f32, %arg7: i32):
      %c0_i32_27 = arith.constant 0 : i32
      %73 = arith.cmpi eq, %arg7, %c0_i32_27 : i32
      %c1_i32 = arith.constant 1 : i32
      %c50_i32 = arith.constant 50 : i32
      %74 = arith.select %73, %c1_i32, %c50_i32 : i32
      %c5000_i32 = arith.constant 5000 : i32
      %75 = arith.subi %c5000_i32, %arg7 : i32
      %76 = arith.minsi %74, %75 : i32
      %c0_i32_28 = arith.constant 0 : i32
      %77 = arith.subi %76, %c0_i32_28 : i32
      %78 = arith.addi %c0_i32_28, %77 : i32
      %c1_i32_29 = arith.constant 1 : i32
      %79:2 = scf.for %arg8 = %c0_i32_28 to %78 step %c1_i32_29 iter_args(%arg9 = %arg4, %arg10 = %arg5) -> (vector<8x1xf32>, vector<128x1xf32>)  : i32 {
        %91 = tpu.transpose %arg9, [1, 0] : vector<8x1xf32> -> vector<1x8xf32>
        %cst_32 = arith.constant dense<0.000000e+00> : vector<1x128xf32>
        %92 = tpu.matmul %91, %33, %cst_32 {dimension_numbers = #tpu.dot_dimension_numbers<[1], [0], [0], [1], [0, 0, 1, 1], [], []>} : vector<1x8xf32>, vector<8x128xf32>, vector<1x128xf32> -> vector<1x128xf32>
        %93 = tpu.transpose %92, [1, 0] : vector<1x128xf32> -> vector<128x1xf32>
        %cst_33 = arith.constant 1.000000e-16 : f32
        %94 = vector.broadcast %cst_33 : f32 to vector<128x1xf32>
        %95 = arith.addf %93, %94 : vector<128x1xf32>
        %96 = arith.divf %39, %95 : vector<128x1xf32>
        %cst_34 = arith.constant dense<0.000000e+00> : vector<8x1xf32>
        %97 = tpu.matmul %33, %96, %cst_34 {dimension_numbers = #tpu.dot_dimension_numbers<[1], [0], [0], [1], [0, 0, 1, 1], [], []>} : vector<8x128xf32>, vector<128x1xf32>, vector<8x1xf32> -> vector<8x1xf32>
        %cst_35 = arith.constant 1.000000e-16 : f32
        %98 = vector.broadcast %cst_35 : f32 to vector<8x1xf32>
        %99 = arith.addf %97, %98 : vector<8x1xf32>
        %100 = arith.divf %36, %99 : vector<8x1xf32>
        scf.yield %100, %96 : vector<8x1xf32>, vector<128x1xf32>
      }
      %80 = arith.addi %arg7, %76 : i32
      %81 = tpu.transpose %79#0, [1, 0] : vector<8x1xf32> -> vector<1x8xf32>
      %cst_30 = arith.constant dense<0.000000e+00> : vector<1x128xf32>
      %82 = tpu.matmul %81, %33, %cst_30 {dimension_numbers = #tpu.dot_dimension_numbers<[1], [0], [0], [1], [0, 0, 1, 1], [], []>} : vector<1x8xf32>, vector<8x128xf32>, vector<1x128xf32> -> vector<1x128xf32>
      %83 = tpu.transpose %82, [1, 0] : vector<1x128xf32> -> vector<128x1xf32>
      %84 = arith.mulf %79#1, %83 : vector<128x1xf32>
      %85 = arith.subf %84, %39 : vector<128x1xf32>
      %86 = math.absf %85 : vector<128x1xf32>
      %87 = vector.shape_cast %86 : vector<128x1xf32> to vector<1x128x1xf32>
      %cst_31 = arith.constant dense<0.000000e+00> : vector<1xf32>
      %88 = vector.multi_reduction <add>, %87, %cst_31 [1, 2] : vector<1x128x1xf32> to vector<1xf32>
      %89 = vector.shape_cast %88 : vector<1xf32> to vector<1x1x1xf32>
      %90 = vector.extract %89[0, 0, 0] : f32 from vector<1x1x1xf32>
      scf.yield %79#0, %79#1, %90, %80 : vector<8x1xf32>, vector<128x1xf32>, f32, i32
    }
    %42 = tpu.transpose %41#1, [1, 0] : vector<128x1xf32> -> vector<1x128xf32>
    %43 = vector.broadcast %42 : vector<1x128xf32> to vector<8x128xf32>
    %44 = arith.mulf %33, %43 : vector<8x128xf32>
    %45 = vector.broadcast %41#0 : vector<8x1xf32> to vector<8x128xf32>
    %46 = arith.mulf %45, %44 : vector<8x128xf32>
    %c0_16 = arith.constant 0 : index
    %c0_17 = arith.constant 0 : index
    %47 = vector.load %arg3[%c0_16, %c0_17] : memref<8x128xf32, #tpu.memory_space<vmem>>, vector<8x128xf32>
    tpu.vector_store %arg3[%c0_16, %c0_17], %46 {strides = array<i32>} : memref<8x128xf32, #tpu.memory_space<vmem>>, vector<8x128xf32>,
    %cst_18 = arith.constant dense<0.000000e+00> : vector<8xf32>
    %48 = vector.multi_reduction <add>, %46, %cst_18 [1] : vector<8x128xf32> to vector<8xf32>
    %49 = vector.shape_cast %48 : vector<8xf32> to vector<8x1xf32>
    %cst_19 = arith.constant dense<0.000000e+00> : vector<128xf32>
    %50 = vector.multi_reduction <add>, %46, %cst_19 [0] : vector<8x128xf32> to vector<128xf32>
    %51 = vector.shape_cast %50 : vector<128xf32> to vector<1x128xf32>
    %cst_20 = arith.constant dense<0.000000e+00> : vector<8x128xf32>
    %52 = tpu.matmul %46, %1, %cst_20 {dimension_numbers = #tpu.dot_dimension_numbers<[1], [0], [0], [1], [0, 0, 1, 1], [], []>} : vector<8x128xf32>, vector<128x128xf32>, vector<8x128xf32> -> vector<8x128xf32>
    %53 = arith.mulf %10, %49 : vector<8x1xf32>
    %54 = vector.shape_cast %53 : vector<8x1xf32> to vector<1x8x1xf32>
    %cst_21 = arith.constant dense<0.000000e+00> : vector<1xf32>
    %55 = vector.multi_reduction <add>, %54, %cst_21 [1, 2] : vector<1x8x1xf32> to vector<1xf32>
    %56 = vector.shape_cast %55 : vector<1xf32> to vector<1x1x1xf32>
    %57 = vector.extract %56[0, 0, 0] : f32 from vector<1x1x1xf32>
    %58 = tpu.transpose %13, [1, 0] : vector<128x1xf32> -> vector<1x128xf32>
    %59 = arith.mulf %58, %51 : vector<1x128xf32>
    %60 = vector.shape_cast %59 : vector<1x128xf32> to vector<1x1x128xf32>
    %cst_22 = arith.constant dense<0.000000e+00> : vector<1xf32>
    %61 = vector.multi_reduction <add>, %60, %cst_22 [1, 2] : vector<1x1x128xf32> to vector<1xf32>
    %62 = vector.shape_cast %61 : vector<1xf32> to vector<1x1x1xf32>
    %63 = vector.extract %62[0, 0, 0] : f32 from vector<1x1x1xf32>
    %64 = arith.addf %57, %63 : f32
    %65 = arith.mulf %0, %52 : vector<8x128xf32>
    %66 = vector.shape_cast %65 : vector<8x128xf32> to vector<1x8x128xf32>
    %cst_23 = arith.constant dense<0.000000e+00> : vector<1xf32>
    %67 = vector.multi_reduction <add>, %66, %cst_23 [1, 2] : vector<1x8x128xf32> to vector<1xf32>
    %68 = vector.shape_cast %67 : vector<1xf32> to vector<1x1x1xf32>
    %69 = vector.extract %68[0, 0, 0] : f32 from vector<1x1x1xf32>
    %cst_24 = arith.constant 2.000000e+00 : f32
    %70 = arith.mulf %cst_24, %69 : f32
    %71 = arith.subf %64, %70 : f32
    %c0_25 = arith.constant 0 : index
    %c0_26 = arith.constant 0 : index
    %72 = memref.load %arg2[%c0_25, %c0_26] : memref<1x1xf32, #tpu.memory_space<smem>>
    memref.store %71, %arg2[%c0_25, %c0_26] : memref<1x1xf32, #tpu.memory_space<smem>>
    return
  }
}

</mosaic_0001>

<llo_original>
// kernel: tpu_custom_call.1
$region0: #{tpu_custom_call.1}
  #allocation0 [shape = 'u32[]', space=smem, size = 0x4, offset = 0x4, fixed_abs, tag = 'smem constant byte address 0x4 - core index']
  #allocation1 [shape = 'u32[144,128]{1,0:T(1,128)}', space=vmem, size = 0x12000, scoped, tag = 'internal scratch']
  %s0 = inlined_call_operand.hbm [shape: f32[8,128], index: 0, kind: input, shape index: {}]
  %s1 = inlined_call_operand.hbm [shape: f32[128,128], index: 1, kind: input, shape index: {}]
  %s2 = inlined_call_operand.hbm [shape: f32[1,1], index: 2, kind: output, shape index: {0}]
  %s3 = inlined_call_operand.hbm [shape: f32[8,128], index: 3, kind: output, shape index: {1}]
  %4 = xla_tuple %s2, %s3
  %s5 = sld [smem:[#allocation0]]
  $region48: #{tpu_custom_call.1} parent=0
    _
  %s7 = ssub.s32 1, %s5
  %s8 = scalar_select 0, %s7, %s5
  $region1: #{tpu_custom_call.1} parent=0
    #allocation2 [shape = 'u8[4096]{0}', space=vmem, size = 0x1000, scoped, tag = 'input window, operand 0, single buffered']
    #allocation3 [shape = 's32[1]{0}', space=sflag, size = 0x4, scoped, tag = 'scoped memory for tpu_custom_call.1']
    #allocation4 [shape = 's32[1]{0}', space=sflag, size = 0x4, scoped, tag = 'scoped memory for tpu_custom_call.1']
    #allocation5 [shape = 's32[1]{0}', space=sflag, size = 0x4, scoped, tag = 'scoped memory for tpu_custom_call.1']
    #allocation6 [shape = 'u8[65536]{0}', space=vmem, size = 0x10000, scoped, tag = 'input window, operand 1, single buffered']
    #allocation7 [shape = 's32[1]{0}', space=sflag, size = 0x4, scoped, tag = 'scoped memory for tpu_custom_call.1']
    #allocation8 [shape = 'u8[512]{0}', space=smem, size = 0x200, scoped, tag = 'output window, operand 0, single buffered']
    #allocation9 [shape = 'u8[4096]{0}', space=vmem, size = 0x1000, scoped, tag = 'output window, operand 1, single buffered']
    %9 = vsyncpa [#allocation3], 0
    %10 = vsyncpa [#allocation7], 0
    %11 = vsyncpa [#allocation5], 0
    %12 = vsyncpa [#allocation4], 0
    // Predicated region
    $region2: #{tpu_custom_call.1} parent=1 // pred_check
      _
    $region3: #{tpu_custom_call.1} parent=1 // pred_check_branch
      %14 = sbr.rel (0) target = $region5
    $region4: #{tpu_custom_call.1} parent=1 // pred_region
      %s16 = ssub.s32 128, 128
      %17 = vsyncadd [#allocation3], %s16
      %s19 = sshll.u32 [#allocation2], 4
      %s20 = int_to_ptr.vmem [resolvable:$true] %s19
      %22 = dma.hbm_to_vmem [thread:$0]  %s0, 128, %s20, [#allocation3]
    $region5: #{tpu_custom_call.1} parent=1 // pred_fallthru
      _
    // Predicated region
    $region6: #{tpu_custom_call.1} parent=1 // pred_check
      _
    $region7: #{tpu_custom_call.1} parent=1 // pred_check_branch
      %24 = sbr.rel (0) target = $region9
    $region8: #{tpu_custom_call.1} parent=1 // pred_region
      %s26 = ssub.s32 2048, 2048
      %27 = vsyncadd [#allocation7], %s26
      %s28 = sshll.u32 [#allocation6], 4
      %s29 = int_to_ptr.vmem [resolvable:$true] %s28
      %34 = dma.hbm_to_vmem [thread:$0]  %s1, 2048, %s29, [#allocation7], 128, 128, 8
    $region9: #{tpu_custom_call.1} parent=1 // pred_fallthru
      _
    // Predicated region
    $region10: #{tpu_custom_call.1} parent=1 // pred_check
      _
    $region11: #{tpu_custom_call.1} parent=1 // pred_check_branch
      %36 = sbr.rel (0) target = $region13
    $region12: #{tpu_custom_call.1} parent=1 // pred_region
      %37 = dma.done [#allocation3], 128
    $region13: #{tpu_custom_call.1} parent=1 // pred_fallthru
      _
    // Predicated region
    $region14: #{tpu_custom_call.1} parent=1 // pred_check
      _
    $region15: #{tpu_custom_call.1} parent=1 // pred_check_branch
      %39 = sbr.rel (0) target = $region17
    $region16: #{tpu_custom_call.1} parent=1 // pred_region
      %40 = dma.done [#allocation7], 2048
    $region17: #{tpu_custom_call.1} parent=1 // pred_fallthru
      _
    %v43 = vld [vmem:[#allocation2] sm:$0xff]
    %v44 = vld [vmem:[#allocation6] sm:$0xff]
    %v45 = vld [vmem:[#allocation6 + $0x8] sm:$0xff]
    %v46 = vld [vmem:[#allocation6 + $0x10] sm:$0xff]
    %v47 = vld [vmem:[#allocation6 + $0x18] sm:$0xff]
    %v48 = vld [vmem:[#allocation6 + $0x20] sm:$0xff]
    %v49 = vld [vmem:[#allocation6 + $0x28] sm:$0xff]
    %v50 = vld [vmem:[#allocation6 + $0x30] sm:$0xff]
    %v51 = vld [vmem:[#allocation6 + $0x38] sm:$0xff]
    %v52 = vld [vmem:[#allocation6 + $0x40] sm:$0xff]
    %v53 = vld [vmem:[#allocation6 + $0x48] sm:$0xff]
    %v54 = vld [vmem:[#allocation6 + $0x50] sm:$0xff]
    %v55 = vld [vmem:[#allocation6 + $0x58] sm:$0xff]
    %v56 = vld [vmem:[#allocation6 + $0x60] sm:$0xff]
    %v57 = vld [vmem:[#allocation6 + $0x68] sm:$0xff]
    %v58 = vld [vmem:[#allocation6 + $0x70] sm:$0xff]
    %v59 = vld [vmem:[#allocation6 + $0x78] sm:$0xff]
    %v60 = vlaneseq
    %v61 = vshrl.u32 %v60, 7
    %vm62 = vcmp.lt.s32.totalorder %v61, 8
    %v63 = vadd.s32 %v61, 8
    %v64 = vadd.s32 %v61, 16
    %v65 = vadd.s32 %v61, 24
    %v66 = vadd.s32 %v61, 32
    %v67 = vadd.s32 %v61, 40
    %v68 = vadd.s32 %v61, 48
    %v69 = vadd.s32 %v61, 56
    %v70 = vadd.s32 %v61, 64
    %v71 = vadd.s32 %v61, 72
    %v72 = vadd.s32 %v61, 80
    %v73 = vadd.s32 %v61, 88
    %v74 = vadd.s32 %v61, 96
    %v75 = vadd.s32 %v61, 104
    %v76 = vadd.s32 %v61, 112
    %v77 = vadd.s32 %v61, 120
    %vm78 = vcmp.lt.s32.totalorder %v63, 8
    %vm79 = vcmp.lt.s32.totalorder %v64, 8
    %vm80 = vcmp.lt.s32.totalorder %v65, 8
    %vm81 = vcmp.lt.s32.totalorder %v66, 8
    %vm82 = vcmp.lt.s32.totalorder %v67, 8
    %vm83 = vcmp.lt.s32.totalorder %v68, 8
    %vm84 = vcmp.lt.s32.totalorder %v69, 8
    %vm85 = vcmp.lt.s32.totalorder %v70, 8
    %vm86 = vcmp.lt.s32.totalorder %v71, 8
    %vm87 = vcmp.lt.s32.totalorder %v72, 8
    %vm88 = vcmp.lt.s32.totalorder %v73, 8
    %vm89 = vcmp.lt.s32.totalorder %v74, 8
    %vm90 = vcmp.lt.s32.totalorder %v75, 8
    %vm91 = vcmp.lt.s32.totalorder %v76, 8
    %vm92 = vcmp.lt.s32.totalorder %v77, 8
    %v93 = vmul.f32 %v43, %v43
    %94 = vadd.xlane.f32.xlu0 %v93
    %v95 = vpop.xlane.xlu0 %94
    %v96 = vmul.f32 %v44, %v44
    %v97 = vmul.f32 %v45, %v45
    %v98 = vmul.f32 %v46, %v46
    %v99 = vmul.f32 %v47, %v47
    %v100 = vmul.f32 %v48, %v48
    %v101 = vmul.f32 %v49, %v49
    %v102 = vmul.f32 %v50, %v50
    %v103 = vmul.f32 %v51, %v51
    %v104 = vmul.f32 %v52, %v52
    %v105 = vmul.f32 %v53, %v53
    %v106 = vmul.f32 %v54, %v54
    %v107 = vmul.f32 %v55, %v55
    %v108 = vmul.f32 %v56, %v56
    %v109 = vmul.f32 %v57, %v57
    %v110 = vmul.f32 %v58, %v58
    %v111 = vmul.f32 %v59, %v59
    %112 = vadd.xlane.f32.xlu0 %v96
    %v113 = vpop.xlane.xlu0 %112
    %114 = vadd.xlane.f32.xlu0 %v97
    %v115 = vpop.xlane.xlu0 %114
    %116 = vadd.xlane.f32.xlu0 %v98
    %v117 = vpop.xlane.xlu0 %116
    %118 = vadd.xlane.f32.xlu0 %v99
    %v119 = vpop.xlane.xlu0 %118
    %120 = vadd.xlane.f32.xlu0 %v100
    %v121 = vpop.xlane.xlu0 %120
    %122 = vadd.xlane.f32.xlu0 %v101
    %v123 = vpop.xlane.xlu0 %122
    %124 = vadd.xlane.f32.xlu0 %v102
    %v125 = vpop.xlane.xlu0 %124
    %126 = vadd.xlane.f32.xlu0 %v103
    %v127 = vpop.xlane.xlu0 %126
    %128 = vadd.xlane.f32.xlu0 %v104
    %v129 = vpop.xlane.xlu0 %128
    %130 = vadd.xlane.f32.xlu0 %v105
    %v131 = vpop.xlane.xlu0 %130
    %132 = vadd.xlane.f32.xlu0 %v106
    %v133 = vpop.xlane.xlu0 %132
    %134 = vadd.xlane.f32.xlu0 %v107
    %v135 = vpop.xlane.xlu0 %134
    %136 = vadd.xlane.f32.xlu0 %v108
    %v137 = vpop.xlane.xlu0 %136
    %138 = vadd.xlane.f32.xlu0 %v109
    %v139 = vpop.xlane.xlu0 %138
    %140 = vadd.xlane.f32.xlu0 %v110
    %v141 = vpop.xlane.xlu0 %140
    %142 = vadd.xlane.f32.xlu0 %v111
    %v143 = vpop.xlane.xlu0 %142
    %144 = vmatprep.subr.mxu0 0.0
    %145 = vmatpush1.xpose.msra.mxu0 %v59
    %146 = vmatprep.subr.mxu0 0.0
    %147 = vmatpush1.xpose.msra.mxu0 %v58
    %148 = vmatprep.subr.mxu0 0.0
    %149 = vmatpush1.xpose.msra.mxu0 %v57
    %150 = vmatprep.subr.mxu0 0.0
    %151 = vmatpush1.xpose.msra.mxu0 %v56
    %152 = vmatprep.subr.mxu0 0.0
    %153 = vmatpush1.xpose.msra.mxu0 %v55
    %154 = vmatprep.subr.mxu0 0.0
    %155 = vmatpush1.xpose.msra.mxu0 %v54
    %156 = vmatprep.subr.mxu0 0.0
    %157 = vmatpush1.xpose.msra.mxu0 %v53
    %158 = vmatprep.subr.mxu0 0.0
    %159 = vmatpush1.xpose.msra.mxu0 %v52
    %160 = vmatprep.subr.mxu0 0.0
    %161 = vmatpush1.xpose.msra.mxu0 %v51
    %162 = vmatprep.subr.mxu0 0.0
    %163 = vmatpush1.xpose.msra.mxu0 %v50
    %164 = vmatprep.subr.mxu0 0.0
    %165 = vmatpush1.xpose.msra.mxu0 %v49
    %166 = vmatprep.subr.mxu0 0.0
    %167 = vmatpush1.xpose.msra.mxu0 %v48
    %168 = vmatprep.subr.mxu0 0.0
    %169 = vmatpush1.xpose.msra.mxu0 %v47
    %170 = vmatprep.subr.mxu0 0.0
    %171 = vmatpush1.xpose.msra.mxu0 %v46
    %172 = vmatprep.subr.mxu0 0.0
    %173 = vmatpush1.xpose.msra.mxu0 %v45
    %174 = vmatprep.subr.mxu0 0.0
    %175 = vmatpush1.xpose.msra.mxu0 %v44
    %176 = vmatprep.subr.mxu0 0.0
    %177 = vmatpush2.xpose.msra.mxu0 0.0
    %178 = vmatprep.subr.mxu0 0.0
    %179 = vmatpush2.xpose.msra.mxu0 0.0
    %180 = vmatprep.subr.mxu0 0.0
    %181 = vmatpush2.xpose.msra.mxu0 0.0
    %182 = vmatprep.subr.mxu0 0.0
    %183 = vmatpush2.xpose.msra.mxu0 0.0
    %184 = vmatprep.subr.mxu0 0.0
    %185 = vmatpush2.xpose.msra.mxu0 0.0
    %186 = vmatprep.subr.mxu0 0.0
    %187 = vmatpush2.xpose.msra.mxu0 0.0
    %188 = vmatprep.subr.mxu0 0.0
    %189 = vmatpush2.xpose.msra.mxu0 0.0
    %190 = vmatprep.subr.mxu0 0.0
    %191 = vmatpush2.xpose.msra.mxu0 0.0
    %192 = vmatprep.subr.mxu0 0.0
    %193 = vmatpush2.xpose.msra.mxu0 0.0
    %194 = vmatprep.subr.mxu0 0.0
    %195 = vmatpush2.xpose.msra.mxu0 0.0
    %196 = vmatprep.subr.mxu0 0.0
    %197 = vmatpush2.xpose.msra.mxu0 0.0
    %198 = vmatprep.subr.mxu0 0.0
    %199 = vmatpush2.xpose.msra.mxu0 0.0
    %200 = vmatprep.subr.mxu0 0.0
    %201 = vmatpush2.xpose.msra.mxu0 0.0
    %202 = vmatprep.subr.mxu0 0.0
    %203 = vmatpush2.xpose.msra.mxu0 0.0
    %204 = vmatprep.subr.mxu0 0.0
    %205 = vmatpush2.xpose.msra.mxu0 0.0
    %206 = vmatprep.subr.mxu0 0.0
    %207 = vmatpush2.xpose.msra.mxu0 0.0
    %208 = vmatprep.mubr.f32.mxu0 0.0
    %209 = vmatmul.mubr.f32.gmra.mxu0 %v43
    %v210 = vpop.f32.mrf.mxu0
    %v211 = vadd.f32 0.0, %v210
    %v212 = vpop.f32.mrf.mxu0
    %213 = vdwg.mxu0
    %214 = vxpose.xlu0.b32.start [1/16] %v113, 128
    %215 = vxpose.xlu0.b32.cont [2/16] %v115, 128
    %216 = vxpose.xlu0.b32.cont [3/16] %v117, 128
    %217 = vxpose.xlu0.b32.cont [4/16] %v119, 128
    %218 = vxpose.xlu0.b32.cont [5/16] %v121, 128
    %219 = vxpose.xlu0.b32.cont [6/16] %v123, 128
    %220 = vxpose.xlu0.b32.cont [7/16] %v125, 128
    %221 = vxpose.xlu0.b32.cont [8/16] %v127, 128
    %222 = vxpose.xlu0.b32.cont [9/16] %v129, 128
    %223 = vxpose.xlu0.b32.cont [10/16] %v131, 128
    %224 = vxpose.xlu0.b32.cont [11/16] %v133, 128
    %225 = vxpose.xlu0.b32.cont [12/16] %v135, 128
    %226 = vxpose.xlu0.b32.cont [13/16] %v137, 128
    %227 = vxpose.xlu0.b32.cont [14/16] %v139, 128
    %228 = vxpose.xlu0.b32.cont [15/16] %v141, 128
    %229 = vxpose.xlu0.b32.end [16/16] %v143, 128
    %v230 = vpop.trf.xlu0
    %v231 = vpop.trf.xlu0
    %v232 = vpop.trf.xlu0
    %v233 = vpop.trf.xlu0
    %v234 = vpop.trf.xlu0
    %v235 = vpop.trf.xlu0
    %v236 = vpop.trf.xlu0
    %v237 = vpop.trf.xlu0
    %v238 = vpop.trf.xlu0
    %v239 = vpop.trf.xlu0
    %v240 = vpop.trf.xlu0
    %v241 = vpop.trf.xlu0
    %v242 = vpop.trf.xlu0
    %v243 = vpop.trf.xlu0
    %v244 = vpop.trf.xlu0
    %v245 = vpop.trf.xlu0
    %v246 = vlaneseq
    %v247 = vshrl.u32 %v246, 7
    %v248 = vsub.s32 0, %v247
    %v249 = vrot.slane %v230, %v248
    %v250 = vadd.f32 %v95, %v249
    %v251 = vmul.f32 %v211, 2.0
    %v252 = vsub.f32 %v250, %v251
    %vm253 = vmpackc.low %vm62, %vm62
    %vm254 = vmpackc.low %vm78, %vm78
    %vm255 = vmpackc.low %vm79, %vm79
    %vm256 = vmpackc.low %vm80, %vm80
    %vm257 = vmpackc.low %vm81, %vm81
    %vm258 = vmpackc.low %vm82, %vm82
    %vm259 = vmpackc.low %vm83, %vm83
    %vm260 = vmpackc.low %vm84, %vm84
    %vm261 = vmpackc.low %vm85, %vm85
    %vm262 = vmpackc.low %vm86, %vm86
    %vm263 = vmpackc.low %vm87, %vm87
    %vm264 = vmpackc.low %vm88, %vm88
    %vm265 = vmpackc.low %vm89, %vm89
    %vm266 = vmpackc.low %vm90, %vm90
    %vm267 = vmpackc.low %vm91, %vm91
    %vm268 = vmpackc.low %vm92, %vm92
    %v269 = vsel %vm253, 65537, 0
    %v270 = vsel %vm254, 65537, 0
    %v271 = vsel %vm255, 65537, 0
    %v272 = vsel %vm256, 65537, 0
    %v273 = vsel %vm257, 65537, 0
    %v274 = vsel %vm258, 65537, 0
    %v275 = vsel %vm259, 65537, 0
    %v276 = vsel %vm260, 65537, 0
    %v277 = vsel %vm261, 65537, 0
    %v278 = vsel %vm262, 65537, 0
    %v279 = vsel %vm263, 65537, 0
    %v280 = vsel %vm264, 65537, 0
    %v281 = vsel %vm265, 65537, 0
    %v282 = vsel %vm266, 65537, 0
    %v283 = vsel %vm267, 65537, 0
    %v284 = vsel %vm268, 65537, 0
    %v285 = vunpack.c.l.b16 %v269
    %v286 = vunpack.c.l.b16 %v270
    %v287 = vunpack.c.l.b16 %v271
    %v288 = vunpack.c.l.b16 %v272
    %v289 = vunpack.c.l.b16 %v273
    %v290 = vunpack.c.l.b16 %v274
    %v291 = vunpack.c.l.b16 %v275
    %v292 = vunpack.c.l.b16 %v276
    %v293 = vunpack.c.l.b16 %v277
    %v294 = vunpack.c.l.b16 %v278
    %v295 = vunpack.c.l.b16 %v279
    %v296 = vunpack.c.l.b16 %v280
    %v297 = vunpack.c.l.b16 %v281
    %v298 = vunpack.c.l.b16 %v282
    %v299 = vunpack.c.l.b16 %v283
    %v300 = vunpack.c.l.b16 %v284
    %v301 = vpack.c.b16 %v286, %v285
    %v302 = vpack.c.b16 %v288, %v287
    %v303 = vpack.c.b16 %v290, %v289
    %v304 = vpack.c.b16 %v292, %v291
    %v305 = vpack.c.b16 %v294, %v293
    %v306 = vpack.c.b16 %v296, %v295
    %v307 = vpack.c.b16 %v298, %v297
    %v308 = vpack.c.b16 %v300, %v299
    %vm309 = vcmp.ne.s16.totalorder %v301, 0
    %vm310 = vcmp.ne.s16.totalorder %v302, 0
    %vm311 = vcmp.ne.s16.totalorder %v303, 0
    %vm312 = vcmp.ne.s16.totalorder %v304, 0
    %vm313 = vcmp.ne.s16.totalorder %v305, 0
    %vm314 = vcmp.ne.s16.totalorder %v306, 0
    %vm315 = vcmp.ne.s16.totalorder %v307, 0
    %vm316 = vcmp.ne.s16.totalorder %v308, 0
    %v317 = vsel %vm309, 65537, 0
    %v318 = vsel %vm310, 65537, 0
    %v319 = vsel %vm311, 65537, 0
    %v320 = vsel %vm312, 65537, 0
    %v321 = vsel %vm313, 65537, 0
    %v322 = vsel %vm314, 65537, 0
    %v323 = vsel %vm315, 65537, 0
    %v324 = vsel %vm316, 65537, 0
    %325 = vxpose.xlu0.c.b16.start [1/8] %v317, 128
    %326 = vxpose.xlu0.c.b16.cont [2/8] %v318, 128
    %327 = vxpose.xlu0.c.b16.cont [3/8] %v319, 128
    %328 = vxpose.xlu0.c.b16.cont [4/8] %v320, 128
    %329 = vxpose.xlu0.c.b16.cont [5/8] %v321, 128
    %330 = vxpose.xlu0.c.b16.cont [6/8] %v322, 128
    %331 = vxpose.xlu0.c.b16.cont [7/8] %v323, 128
    %332 = vxpose.xlu0.c.b16.end [8/8] %v324, 128
    %v333 = vpop.trf.xlu0
    %v334 = vpop.trf.xlu0
    %v335 = vpop.trf.xlu0
    %v336 = vpop.trf.xlu0
    %v337 = vpop.trf.xlu0
    %v338 = vpop.trf.xlu0
    %v339 = vpop.trf.xlu0
    %v340 = vpop.trf.xlu0
    %vm341 = vcmp.ne.s16.totalorder %v333, 0
    %v342 = vsel %vm62, 1, 0
    %vm343 = vcmp.eq.s32.totalorder %v342, 1
    %v344 = vsel %vm341, 65537, 0
    %v345 = vunpack.c.l.b16 %v344
    %vm346 = vcmp.ne.s32.totalorder %v345, 0
    %v347 = vsel %vm346, 1, 0
    %v348 = vlaneseq
    %v349 = vshrl.u32 %v348, 7
    %v350 = vsub.s32 0, %v349
    %v351 = vrot.slane %v347, %v350
    %vm352 = vcmp.eq.s32.totalorder %v351, 1
    %vm353 = vmand %vm343, %vm352
    %v354 = vsub.f32 0.0, %v252
    %v355 = vmul.f32 %v354, 0.05
    %v356 = vmul.f32 %v355, 1.442695
    %v357 = vpow.pop %v356
    %v358 = vsel %vm353, %v357, 0.0
    %v359 = vsel %vm62, 0.125, 0.0
    %v360 = vsel %vm78, 0.125, 0.0
    %v361 = vsel %vm79, 0.125, 0.0
    %v362 = vsel %vm80, 0.125, 0.0
    %v363 = vsel %vm81, 0.125, 0.0
    %v364 = vsel %vm82, 0.125, 0.0
    %v365 = vsel %vm83, 0.125, 0.0
    %v366 = vsel %vm84, 0.125, 0.0
    %v367 = vsel %vm85, 0.125, 0.0
    %v368 = vsel %vm86, 0.125, 0.0
    %v369 = vsel %vm87, 0.125, 0.0
    %v370 = vsel %vm88, 0.125, 0.0
    %v371 = vsel %vm89, 0.125, 0.0
    %v372 = vsel %vm90, 0.125, 0.0
    %v373 = vsel %vm91, 0.125, 0.0
    %v374 = vsel %vm92, 0.125, 0.0
    // While loop
    $region18: #{tpu_custom_call.1} parent=1 // loop_pre_header
      _
    $region19: #{tpu_custom_call.1} parent=1 // loop_header
      %v376 = vphi %v359, %v412
      %v377 = vphi 0.0, %v413
      %v378 = vphi 0.0, %v414
      %v379 = vphi 0.0, %v415
      %v380 = vphi 0.0, %v416
      %v381 = vphi 0.0, %v417
      %v382 = vphi 0.0, %v418
      %v383 = vphi 0.0, %v419
      %v384 = vphi 0.0, %v420
      %v385 = vphi 0.0, %v421
      %v386 = vphi 0.0, %v422
      %v387 = vphi 0.0, %v423
      %v388 = vphi 0.0, %v424
      %v389 = vphi 0.0, %v425
      %v390 = vphi 0.0, %v426
      %v391 = vphi 0.0, %v427
      %v392 = vphi 0.0, %v428
      %s393 = sphi 1.0, %s914
      %s394 = sphi 0, %s687
      %p395 = scmp.gt.f32.partialorder %s393, 0.005
      %p396 = scmp.lt.s32.totalorder %s394, 5000
      %p397 = pnand %p395, %p396
      %p398 = pneg %p397
    $region20: #{tpu_custom_call.1} parent=1 // loop_header_branch
      %400 = sbr.rel (%p397) target = $region24
    $region21: #{tpu_custom_call.1} parent=1 // loop_body
      %p401 = scmp.eq.s32.totalorder %s394, 0
      %s402 = scalar_select %p401, 1, 50
      %s403 = ssub.s32 5000, %s394
      %p404 = scmp.lt.s32.totalorder %s402, %s403
      %s405 = scalar_select %p404, %s402, %s403
      // While loop
      $region25: #{tpu_custom_call.1} parent=21 // loop_pre_header
        _
      $region26: #{tpu_custom_call.1} parent=21 // loop_header
        %s407 = sphi 0, %s409
        %p408 = scmp.ge.s32.totalorder %s407, %s405
        %v412 = vphi %v376, %v686
        %v413 = vphi %v377, %v584
        %v414 = vphi %v378, %v586
        %v415 = vphi %v379, %v588
        %v416 = vphi %v380, %v590
        %v417 = vphi %v381, %v592
        %v418 = vphi %v382, %v594
        %v419 = vphi %v383, %v596
        %v420 = vphi %v384, %v598
        %v421 = vphi %v385, %v600
        %v422 = vphi %v386, %v602
        %v423 = vphi %v387, %v604
        %v424 = vphi %v388, %v606
        %v425 = vphi %v389, %v608
        %v426 = vphi %v390, %v610
        %v427 = vphi %v391, %v612
        %v428 = vphi %v392, %v614
      $region27: #{tpu_custom_call.1} parent=21 // loop_header_branch
        %411 = sbr.rel (%p408) target = $region31
      $region28: #{tpu_custom_call.1} parent=21 // loop_body
        %429 = vxpose.xlu0.b32.start [1/16] %v412, 128
        %430 = vxpose.xlu0.b32.cont [2/16] 0.0, 128
        %431 = vxpose.xlu0.b32.cont [3/16] 0.0, 128
        %432 = vxpose.xlu0.b32.cont [4/16] 0.0, 128
        %433 = vxpose.xlu0.b32.cont [5/16] 0.0, 128
        %434 = vxpose.xlu0.b32.cont [6/16] 0.0, 128
        %435 = vxpose.xlu0.b32.cont [7/16] 0.0, 128
        %436 = vxpose.xlu0.b32.cont [8/16] 0.0, 128
        %437 = vxpose.xlu0.b32.cont [9/16] 0.0, 128
        %438 = vxpose.xlu0.b32.cont [10/16] 0.0, 128
        %439 = vxpose.xlu0.b32.cont [11/16] 0.0, 128
        %440 = vxpose.xlu0.b32.cont [12/16] 0.0, 128
        %441 = vxpose.xlu0.b32.cont [13/16] 0.0, 128
        %442 = vxpose.xlu0.b32.cont [14/16] 0.0, 128
        %443 = vxpose.xlu0.b32.cont [15/16] 0.0, 128
        %444 = vxpose.xlu0.b32.end [16/16] 0.0, 128
        %v445 = vpop.trf.xlu0
        %v446 = vpop.trf.xlu0
        %v447 = vpop.trf.xlu0
        %v448 = vpop.trf.xlu0
        %v449 = vpop.trf.xlu0
        %v450 = vpop.trf.xlu0
        %v451 = vpop.trf.xlu0
        %v452 = vpop.trf.xlu0
        %v453 = vpop.trf.xlu0
        %v454 = vpop.trf.xlu0
        %v455 = vpop.trf.xlu0
        %v456 = vpop.trf.xlu0
        %v457 = vpop.trf.xlu0
        %v458 = vpop.trf.xlu0
        %v459 = vpop.trf.xlu0
        %v460 = vpop.trf.xlu0
        %vm461 = vcmask 64512
        %v463 = vsel %vm461, %v445, 0
        %465 = vmatprep.subr.mxu0 0.0
        %466 = vmatpush1.msra.mxu0 0.0
        %467 = vmatprep.subr.mxu0 0.0
        %468 = vmatpush1.msra.mxu0 0.0
        %469 = vmatprep.subr.mxu0 0.0
        %470 = vmatpush1.msra.mxu0 0.0
        %471 = vmatprep.subr.mxu0 0.0
        %472 = vmatpush1.msra.mxu0 0.0
        %473 = vmatprep.subr.mxu0 0.0
        %474 = vmatpush1.msra.mxu0 0.0
        %475 = vmatprep.subr.mxu0 0.0
        %476 = vmatpush1.msra.mxu0 0.0
        %477 = vmatprep.subr.mxu0 0.0
        %478 = vmatpush1.msra.mxu0 0.0
        %479 = vmatprep.subr.mxu0 0.0
        %480 = vmatpush1.msra.mxu0 0.0
        %481 = vmatprep.subr.mxu0 0.0
        %482 = vmatpush1.msra.mxu0 0.0
        %483 = vmatprep.subr.mxu0 0.0
        %484 = vmatpush1.msra.mxu0 0.0
        %485 = vmatprep.subr.mxu0 0.0
        %486 = vmatpush1.msra.mxu0 0.0
        %487 = vmatprep.subr.mxu0 0.0
        %488 = vmatpush1.msra.mxu0 0.0
        %489 = vmatprep.subr.mxu0 0.0
        %490 = vmatpush1.msra.mxu0 0.0
        %491 = vmatprep.subr.mxu0 0.0
        %492 = vmatpush1.msra.mxu0 0.0
        %493 = vmatprep.subr.mxu0 0.0
        %494 = vmatpush1.msra.mxu0 0.0
        %495 = vmatprep.subr.mxu0 0.0
        %496 = vmatpush1.msra.mxu0 %v358
        %497 = vmatprep.subr.mxu0 0.0
        %498 = vmatpush2.msra.mxu0 0.0
        %499 = vmatprep.subr.mxu0 0.0
        %500 = vmatpush2.msra.mxu0 0.0
        %501 = vmatprep.subr.mxu0 0.0
        %502 = vmatpush2.msra.mxu0 0.0
        %503 = vmatprep.subr.mxu0 0.0
        %504 = vmatpush2.msra.mxu0 0.0
        %505 = vmatprep.subr.mxu0 0.0
        %506 = vmatpush2.msra.mxu0 0.0
        %507 = vmatprep.subr.mxu0 0.0
        %508 = vmatpush2.msra.mxu0 0.0
        %509 = vmatprep.subr.mxu0 0.0
        %510 = vmatpush2.msra.mxu0 0.0
        %511 = vmatprep.subr.mxu0 0.0
        %512 = vmatpush2.msra.mxu0 0.0
        %513 = vmatprep.subr.mxu0 0.0
        %514 = vmatpush2.msra.mxu0 0.0
        %515 = vmatprep.subr.mxu0 0.0
        %516 = vmatpush2.msra.mxu0 0.0
        %517 = vmatprep.subr.mxu0 0.0
        %518 = vmatpush2.msra.mxu0 0.0
        %519 = vmatprep.subr.mxu0 0.0
        %520 = vmatpush2.msra.mxu0 0.0
        %521 = vmatprep.subr.mxu0 0.0
        %522 = vmatpush2.msra.mxu0 0.0
        %523 = vmatprep.subr.mxu0 0.0
        %524 = vmatpush2.msra.mxu0 0.0
        %525 = vmatprep.subr.mxu0 0.0
        %526 = vmatpush2.msra.mxu0 0.0
        %527 = vmatprep.subr.mxu0 0.0
        %528 = vmatpush2.msra.mxu0 0.0
        %529 = vmatprep.mubr.f32.mxu0 0.0
        %530 = vmatmul.mubr.f32.gmra.mxu0 %v463
        %v531 = vpop.f32.mrf.mxu0
        %v532 = vadd.f32 0.0, %v531
        %v533 = vpop.f32.mrf.mxu0
        %534 = vdwg.mxu0
        %535 = vxpose.xlu0.b32.start [1/16] %v532, 128
        %536 = vxpose.xlu0.b32.cont [2/16] 0.0, 128
        %537 = vxpose.xlu0.b32.cont [3/16] 0.0, 128
        %538 = vxpose.xlu0.b32.cont [4/16] 0.0, 128
        %539 = vxpose.xlu0.b32.cont [5/16] 0.0, 128
        %540 = vxpose.xlu0.b32.cont [6/16] 0.0, 128
        %541 = vxpose.xlu0.b32.cont [7/16] 0.0, 128
        %542 = vxpose.xlu0.b32.cont [8/16] 0.0, 128
        %543 = vxpose.xlu0.b32.cont [9/16] 0.0, 128
        %544 = vxpose.xlu0.b32.cont [10/16] 0.0, 128
        %545 = vxpose.xlu0.b32.cont [11/16] 0.0, 128
        %546 = vxpose.xlu0.b32.cont [12/16] 0.0, 128
        %547 = vxpose.xlu0.b32.cont [13/16] 0.0, 128
        %548 = vxpose.xlu0.b32.cont [14/16] 0.0, 128
        %549 = vxpose.xlu0.b32.cont [15/16] 0.0, 128
        %550 = vxpose.xlu0.b32.end [16/16] 0.0, 128
        %v551 = vpop.trf.xlu0
        %v552 = vpop.trf.xlu0
        %v553 = vpop.trf.xlu0
        %v554 = vpop.trf.xlu0
        %v555 = vpop.trf.xlu0
        %v556 = vpop.trf.xlu0
        %v557 = vpop.trf.xlu0
        %v558 = vpop.trf.xlu0
        %v559 = vpop.trf.xlu0
        %v560 = vpop.trf.xlu0
        %v561 = vpop.trf.xlu0
        %v562 = vpop.trf.xlu0
        %v563 = vpop.trf.xlu0
        %v564 = vpop.trf.xlu0
        %v565 = vpop.trf.xlu0
        %v566 = vpop.trf.xlu0
        %v567 = vadd.f32 %v551, 1e-16
        %v568 = vadd.f32 %v552, 1e-16
        %v569 = vadd.f32 %v553, 1e-16
        %v570 = vadd.f32 %v554, 1e-16
        %v571 = vadd.f32 %v555, 1e-16
        %v572 = vadd.f32 %v556, 1e-16
        %v573 = vadd.f32 %v557, 1e-16
        %v574 = vadd.f32 %v558, 1e-16
        %v575 = vadd.f32 %v559, 1e-16
        %v576 = vadd.f32 %v560, 1e-16
        %v577 = vadd.f32 %v561, 1e-16
        %v578 = vadd.f32 %v562, 1e-16
        %v579 = vadd.f32 %v563, 1e-16
        %v580 = vadd.f32 %v564, 1e-16
        %v581 = vadd.f32 %v565, 1e-16
        %v582 = vadd.f32 %v566, 1e-16
        %v583 = vrcp.pop %v567
        %v584 = vmul.f32 %v359, %v583
        %v585 = vrcp.pop %v568
        %v586 = vmul.f32 %v360, %v585
        %v587 = vrcp.pop %v569
        %v588 = vmul.f32 %v361, %v587
        %v589 = vrcp.pop %v570
        %v590 = vmul.f32 %v362, %v589
        %v591 = vrcp.pop %v571
        %v592 = vmul.f32 %v363, %v591
        %v593 = vrcp.pop %v572
        %v594 = vmul.f32 %v364, %v593
        %v595 = vrcp.pop %v573
        %v596 = vmul.f32 %v365, %v595
        %v597 = vrcp.pop %v574
        %v598 = vmul.f32 %v366, %v597
        %v599 = vrcp.pop %v575
        %v600 = vmul.f32 %v367, %v599
        %v601 = vrcp.pop %v576
        %v602 = vmul.f32 %v368, %v601
        %v603 = vrcp.pop %v577
        %v604 = vmul.f32 %v369, %v603
        %v605 = vrcp.pop %v578
        %v606 = vmul.f32 %v370, %v605
        %v607 = vrcp.pop %v579
        %v608 = vmul.f32 %v371, %v607
        %v609 = vrcp.pop %v580
        %v610 = vmul.f32 %v372, %v609
        %v611 = vrcp.pop %v581
        %v612 = vmul.f32 %v373, %v611
        %v613 = vrcp.pop %v582
        %v614 = vmul.f32 %v374, %v613
        %615 = vmatprep.subr.mxu0 0.0
        %616 = vmatpush1.msra.mxu0 %v614
        %617 = vmatprep.subr.mxu0 0.0
        %618 = vmatpush1.msra.mxu0 %v612
        %619 = vmatprep.subr.mxu0 0.0
        %620 = vmatpush1.msra.mxu0 %v610
        %621 = vmatprep.subr.mxu0 0.0
        %622 = vmatpush1.msra.mxu0 %v608
        %623 = vmatprep.subr.mxu0 0.0
        %624 = vmatpush1.msra.mxu0 %v606
        %625 = vmatprep.subr.mxu0 0.0
        %626 = vmatpush1.msra.mxu0 %v604
        %627 = vmatprep.subr.mxu0 0.0
        %628 = vmatpush1.msra.mxu0 %v602
        %629 = vmatprep.subr.mxu0 0.0
        %630 = vmatpush1.msra.mxu0 %v600
        %631 = vmatprep.subr.mxu0 0.0
        %632 = vmatpush1.msra.mxu0 %v598
        %633 = vmatprep.subr.mxu0 0.0
        %634 = vmatpush1.msra.mxu0 %v596
        %635 = vmatprep.subr.mxu0 0.0
        %636 = vmatpush1.msra.mxu0 %v594
        %637 = vmatprep.subr.mxu0 0.0
        %638 = vmatpush1.msra.mxu0 %v592
        %639 = vmatprep.subr.mxu0 0.0
        %640 = vmatpush1.msra.mxu0 %v590
        %641 = vmatprep.subr.mxu0 0.0
        %642 = vmatpush1.msra.mxu0 %v588
        %643 = vmatprep.subr.mxu0 0.0
        %644 = vmatpush1.msra.mxu0 %v586
        %645 = vmatprep.subr.mxu0 0.0
        %646 = vmatpush1.msra.mxu0 %v584
        %647 = vmatprep.subr.mxu0 0.0
        %648 = vmatpush2.msra.mxu0 0.0
        %649 = vmatprep.subr.mxu0 0.0
        %650 = vmatpush2.msra.mxu0 0.0
        %651 = vmatprep.subr.mxu0 0.0
        %652 = vmatpush2.msra.mxu0 0.0
        %653 = vmatprep.subr.mxu0 0.0
        %654 = vmatpush2.msra.mxu0 0.0
        %655 = vmatprep.subr.mxu0 0.0
        %656 = vmatpush2.msra.mxu0 0.0
        %657 = vmatprep.subr.mxu0 0.0
        %658 = vmatpush2.msra.mxu0 0.0
        %659 = vmatprep.subr.mxu0 0.0
        %660 = vmatpush2.msra.mxu0 0.0
        %661 = vmatprep.subr.mxu0 0.0
        %662 = vmatpush2.msra.mxu0 0.0
        %663 = vmatprep.subr.mxu0 0.0
        %664 = vmatpush2.msra.mxu0 0.0
        %665 = vmatprep.subr.mxu0 0.0
        %666 = vmatpush2.msra.mxu0 0.0
        %667 = vmatprep.subr.mxu0 0.0
        %668 = vmatpush2.msra.mxu0 0.0
        %669 = vmatprep.subr.mxu0 0.0
        %670 = vmatpush2.msra.mxu0 0.0
        %671 = vmatprep.subr.mxu0 0.0
        %672 = vmatpush2.msra.mxu0 0.0
        %673 = vmatprep.subr.mxu0 0.0
        %674 = vmatpush2.msra.mxu0 0.0
        %675 = vmatprep.subr.mxu0 0.0
        %676 = vmatpush2.msra.mxu0 0.0
        %677 = vmatprep.subr.mxu0 0.0
        %678 = vmatpush2.msra.mxu0 0.0
        %679 = vmatprep.mubr.f32.mxu0 0.0
        %680 = vmatmul.mubr.f32.gmra.mxu0 %v358
        %v681 = vpop.f32.mrf.mxu0
        %v682 = vadd.f32 1e-16, %v681
        %v683 = vpop.f32.mrf.mxu0
        %684 = vdwg.mxu0
        %v685 = vrcp.pop %v682
        %v686 = vmul.f32 %v359, %v685
      $region29: #{tpu_custom_call.1} parent=21 // loop_footer
        %s409 = sadd.s32 %s407, 1
      $region30: #{tpu_custom_call.1} parent=21 // loop_footer_branch
        %406 = sbr.rel target = $region26
      $region31: #{tpu_custom_call.1} parent=21 // loop_exit
        _
      %s687 = sadd.s32 %s394, %s405
      %688 = vxpose.xlu0.b32.start [1/16] %v412, 128
      %689 = vxpose.xlu0.b32.cont [2/16] 0.0, 128
      %690 = vxpose.xlu0.b32.cont [3/16] 0.0, 128
      %691 = vxpose.xlu0.b32.cont [4/16] 0.0, 128
      %692 = vxpose.xlu0.b32.cont [5/16] 0.0, 128
      %693 = vxpose.xlu0.b32.cont [6/16] 0.0, 128
      %694 = vxpose.xlu0.b32.cont [7/16] 0.0, 128
      %695 = vxpose.xlu0.b32.cont [8/16] 0.0, 128
      %696 = vxpose.xlu0.b32.cont [9/16] 0.0, 128
      %697 = vxpose.xlu0.b32.cont [10/16] 0.0, 128
      %698 = vxpose.xlu0.b32.cont [11/16] 0.0, 128
      %699 = vxpose.xlu0.b32.cont [12/16] 0.0, 128
      %700 = vxpose.xlu0.b32.cont [13/16] 0.0, 128
      %701 = vxpose.xlu0.b32.cont [14/16] 0.0, 128
      %702 = vxpose.xlu0.b32.cont [15/16] 0.0, 128
      %703 = vxpose.xlu0.b32.end [16/16] 0.0, 128
      %v704 = vpop.trf.xlu0
      %v705 = vpop.trf.xlu0
      %v706 = vpop.trf.xlu0
      %v707 = vpop.trf.xlu0
      %v708 = vpop.trf.xlu0
      %v709 = vpop.trf.xlu0
      %v710 = vpop.trf.xlu0
      %v711 = vpop.trf.xlu0
      %v712 = vpop.trf.xlu0
      %v713 = vpop.trf.xlu0
      %v714 = vpop.trf.xlu0
      %v715 = vpop.trf.xlu0
      %v716 = vpop.trf.xlu0
      %v717 = vpop.trf.xlu0
      %v718 = vpop.trf.xlu0
      %v719 = vpop.trf.xlu0
      %vm720 = vcmask 64512
      %v722 = vsel %vm720, %v704, 0
      %724 = vmatprep.subr.mxu0 0.0
      %725 = vmatpush1.msra.mxu0 0.0
      %726 = vmatprep.subr.mxu0 0.0
      %727 = vmatpush1.msra.mxu0 0.0
      %728 = vmatprep.subr.mxu0 0.0
      %729 = vmatpush1.msra.mxu0 0.0
      %730 = vmatprep.subr.mxu0 0.0
      %731 = vmatpush1.msra.mxu0 0.0
      %732 = vmatprep.subr.mxu0 0.0
      %733 = vmatpush1.msra.mxu0 0.0
      %734 = vmatprep.subr.mxu0 0.0
      %735 = vmatpush1.msra.mxu0 0.0
      %736 = vmatprep.subr.mxu0 0.0
      %737 = vmatpush1.msra.mxu0 0.0
      %738 = vmatprep.subr.mxu0 0.0
      %739 = vmatpush1.msra.mxu0 0.0
      %740 = vmatprep.subr.mxu0 0.0
      %741 = vmatpush1.msra.mxu0 0.0
      %742 = vmatprep.subr.mxu0 0.0
      %743 = vmatpush1.msra.mxu0 0.0
      %744 = vmatprep.subr.mxu0 0.0
      %745 = vmatpush1.msra.mxu0 0.0
      %746 = vmatprep.subr.mxu0 0.0
      %747 = vmatpush1.msra.mxu0 0.0
      %748 = vmatprep.subr.mxu0 0.0
      %749 = vmatpush1.msra.mxu0 0.0
      %750 = vmatprep.subr.mxu0 0.0
      %751 = vmatpush1.msra.mxu0 0.0
      %752 = vmatprep.subr.mxu0 0.0
      %753 = vmatpush1.msra.mxu0 0.0
      %754 = vmatprep.subr.mxu0 0.0
      %755 = vmatpush1.msra.mxu0 %v358
      %756 = vmatprep.subr.mxu0 0.0
      %757 = vmatpush2.msra.mxu0 0.0
      %758 = vmatprep.subr.mxu0 0.0
      %759 = vmatpush2.msra.mxu0 0.0
      %760 = vmatprep.subr.mxu0 0.0
      %761 = vmatpush2.msra.mxu0 0.0
      %762 = vmatprep.subr.mxu0 0.0
      %763 = vmatpush2.msra.mxu0 0.0
      %764 = vmatprep.subr.mxu0 0.0
      %765 = vmatpush2.msra.mxu0 0.0
      %766 = vmatprep.subr.mxu0 0.0
      %767 = vmatpush2.msra.mxu0 0.0
      %768 = vmatprep.subr.mxu0 0.0
      %769 = vmatpush2.msra.mxu0 0.0
      %770 = vmatprep.subr.mxu0 0.0
      %771 = vmatpush2.msra.mxu0 0.0
      %772 = vmatprep.subr.mxu0 0.0
      %773 = vmatpush2.msra.mxu0 0.0
      %774 = vmatprep.subr.mxu0 0.0
      %775 = vmatpush2.msra.mxu0 0.0
      %776 = vmatprep.subr.mxu0 0.0
      %777 = vmatpush2.msra.mxu0 0.0
      %778 = vmatprep.subr.mxu0 0.0
      %779 = vmatpush2.msra.mxu0 0.0
      %780 = vmatprep.subr.mxu0 0.0
      %781 = vmatpush2.msra.mxu0 0.0
      %782 = vmatprep.subr.mxu0 0.0
      %783 = vmatpush2.msra.mxu0 0.0
      %784 = vmatprep.subr.mxu0 0.0
      %785 = vmatpush2.msra.mxu0 0.0
      %786 = vmatprep.subr.mxu0 0.0
      %787 = vmatpush2.msra.mxu0 0.0
      %788 = vmatprep.mubr.f32.mxu0 0.0
      %789 = vmatmul.mubr.f32.gmra.mxu0 %v722
      %v790 = vpop.f32.mrf.mxu0
      %v791 = vadd.f32 0.0, %v790
      %v792 = vpop.f32.mrf.mxu0
      %793 = vdwg.mxu0
      %794 = vxpose.xlu0.b32.start [1/16] %v791, 128
      %795 = vxpose.xlu0.b32.cont [2/16] 0.0, 128
      %796 = vxpose.xlu0.b32.cont [3/16] 0.0, 128
      %797 = vxpose.xlu0.b32.cont [4/16] 0.0, 128
      %798 = vxpose.xlu0.b32.cont [5/16] 0.0, 128
      %799 = vxpose.xlu0.b32.cont [6/16] 0.0, 128
      %800 = vxpose.xlu0.b32.cont [7/16] 0.0, 128
      %801 = vxpose.xlu0.b32.cont [8/16] 0.0, 128
      %802 = vxpose.xlu0.b32.cont [9/16] 0.0, 128
      %803 = vxpose.xlu0.b32.cont [10/16] 0.0, 128
      %804 = vxpose.xlu0.b32.cont [11/16] 0.0, 128
      %805 = vxpose.xlu0.b32.cont [12/16] 0.0, 128
      %806 = vxpose.xlu0.b32.cont [13/16] 0.0, 128
      %807 = vxpose.xlu0.b32.cont [14/16] 0.0, 128
      %808 = vxpose.xlu0.b32.cont [15/16] 0.0, 128
      %809 = vxpose.xlu0.b32.end [16/16] 0.0, 128
      %v810 = vpop.trf.xlu0
      %v811 = vpop.trf.xlu0
      %v812 = vpop.trf.xlu0
      %v813 = vpop.trf.xlu0
      %v814 = vpop.trf.xlu0
      %v815 = vpop.trf.xlu0
      %v816 = vpop.trf.xlu0
      %v817 = vpop.trf.xlu0
      %v818 = vpop.trf.xlu0
      %v819 = vpop.trf.xlu0
      %v820 = vpop.trf.xlu0
      %v821 = vpop.trf.xlu0
      %v822 = vpop.trf.xlu0
      %v823 = vpop.trf.xlu0
      %v824 = vpop.trf.xlu0
      %v825 = vpop.trf.xlu0
      %v826 = vmul.f32 %v413, %v810
      %v827 = vmul.f32 %v414, %v811
      %v828 = vmul.f32 %v415, %v812
      %v829 = vmul.f32 %v416, %v813
      %v830 = vmul.f32 %v417, %v814
      %v831 = vmul.f32 %v418, %v815
      %v832 = vmul.f32 %v419, %v816
      %v833 = vmul.f32 %v420, %v817
      %v834 = vmul.f32 %v421, %v818
      %v835 = vmul.f32 %v422, %v819
      %v836 = vmul.f32 %v423, %v820
      %v837 = vmul.f32 %v424, %v821
      %v838 = vmul.f32 %v425, %v822
      %v839 = vmul.f32 %v426, %v823
      %v840 = vmul.f32 %v427, %v824
      %v841 = vmul.f32 %v428, %v825
      %v842 = vsub.f32 %v826, %v359
      %v843 = vsub.f32 %v827, %v360
      %v844 = vsub.f32 %v828, %v361
      %v845 = vsub.f32 %v829, %v362
      %v846 = vsub.f32 %v830, %v363
      %v847 = vsub.f32 %v831, %v364
      %v848 = vsub.f32 %v832, %v365
      %v849 = vsub.f32 %v833, %v366
      %v850 = vsub.f32 %v834, %v367
      %v851 = vsub.f32 %v835, %v368
      %v852 = vsub.f32 %v836, %v369
      %v853 = vsub.f32 %v837, %v370
      %v854 = vsub.f32 %v838, %v371
      %v855 = vsub.f32 %v839, %v372
      %v856 = vsub.f32 %v840, %v373
      %v857 = vsub.f32 %v841, %v374
      %v858 = vand.u32 2147483647, %v842
      %v859 = vand.u32 2147483647, %v843
      %v860 = vand.u32 2147483647, %v844
      %v861 = vand.u32 2147483647, %v845
      %v862 = vand.u32 2147483647, %v846
      %v863 = vand.u32 2147483647, %v847
      %v864 = vand.u32 2147483647, %v848
      %v865 = vand.u32 2147483647, %v849
      %v866 = vand.u32 2147483647, %v850
      %v867 = vand.u32 2147483647, %v851
      %v868 = vand.u32 2147483647, %v852
      %v869 = vand.u32 2147483647, %v853
      %v870 = vand.u32 2147483647, %v854
      %v871 = vand.u32 2147483647, %v855
      %v872 = vand.u32 2147483647, %v856
      %v873 = vand.u32 2147483647, %v857
      %vm874 = vcmask 7168
      %v875 = vsel %vm874, %v858, 0.0
      %v876 = vsel %vm874, %v859, 0.0
      %v877 = vadd.f32 %v875, %v876
      %v878 = vsel %vm874, %v860, 0.0
      %v879 = vadd.f32 %v877, %v878
      %v880 = vsel %vm874, %v861, 0.0
      %v881 = vadd.f32 %v879, %v880
      %v882 = vsel %vm874, %v862, 0.0
      %v883 = vadd.f32 %v881, %v882
      %v884 = vsel %vm874, %v863, 0.0
      %v885 = vadd.f32 %v883, %v884
      %v886 = vsel %vm874, %v864, 0.0
      %v887 = vadd.f32 %v885, %v886
      %v888 = vsel %vm874, %v865, 0.0
      %v889 = vadd.f32 %v887, %v888
      %v890 = vsel %vm874, %v866, 0.0
      %v891 = vadd.f32 %v889, %v890
      %v892 = vsel %vm874, %v867, 0.0
      %v893 = vadd.f32 %v891, %v892
      %v894 = vsel %vm874, %v868, 0.0
      %v895 = vadd.f32 %v893, %v894
      %v896 = vsel %vm874, %v869, 0.0
      %v897 = vadd.f32 %v895, %v896
      %v898 = vsel %vm874, %v870, 0.0
      %v899 = vadd.f32 %v897, %v898
      %v900 = vsel %vm874, %v871, 0.0
      %v901 = vadd.f32 %v899, %v900
      %v902 = vsel %vm874, %v872, 0.0
      %v903 = vadd.f32 %v901, %v902
      %v904 = vsel %vm874, %v873, 0.0
      %v905 = vadd.f32 %v903, %v904
      %906 = vadd.xlane.f32.xlu0 %v905
      %v907 = vpop.xlane.xlu0 %906
      %v908 = vrot.slane %v907, 4
      %v909 = vadd.f32 %v907, %v908
      %v910 = vrot.slane %v909, 2
      %v911 = vadd.f32 %v909, %v910
      %v912 = vrot.slane %v911, 1
      %v913 = vadd.f32 %v911, %v912
      %s914 = vtos %v913
    $region22: #{tpu_custom_call.1} parent=1 // loop_footer
      _
    $region23: #{tpu_custom_call.1} parent=1 // loop_footer_branch
      %375 = sbr.rel target = $region19
    $region24: #{tpu_custom_call.1} parent=1 // loop_exit
      _
    %915 = vxpose.xlu0.b32.start [1/16] %v377, 128
    %916 = vxpose.xlu0.b32.cont [2/16] %v378, 128
    %917 = vxpose.xlu0.b32.cont [3/16] %v379, 128
    %918 = vxpose.xlu0.b32.cont [4/16] %v380, 128
    %919 = vxpose.xlu0.b32.cont [5/16] %v381, 128
    %920 = vxpose.xlu0.b32.cont [6/16] %v382, 128
    %921 = vxpose.xlu0.b32.cont [7/16] %v383, 128
    %922 = vxpose.xlu0.b32.cont [8/16] %v384, 128
    %923 = vxpose.xlu0.b32.cont [9/16] %v385, 128
    %924 = vxpose.xlu0.b32.cont [10/16] %v386, 128
    %925 = vxpose.xlu0.b32.cont [11/16] %v387, 128
    %926 = vxpose.xlu0.b32.cont [12/16] %v388, 128
    %927 = vxpose.xlu0.b32.cont [13/16] %v389, 128
    %928 = vxpose.xlu0.b32.cont [14/16] %v390, 128
    %929 = vxpose.xlu0.b32.cont [15/16] %v391, 128
    %930 = vxpose.xlu0.b32.end [16/16] %v392, 128
    %v931 = vpop.trf.xlu0
    %v932 = vpop.trf.xlu0
    %v933 = vpop.trf.xlu0
    %v934 = vpop.trf.xlu0
    %v935 = vpop.trf.xlu0
    %v936 = vpop.trf.xlu0
    %v937 = vpop.trf.xlu0
    %v938 = vpop.trf.xlu0
    %v939 = vpop.trf.xlu0
    %v940 = vpop.trf.xlu0
    %v941 = vpop.trf.xlu0
    %v942 = vpop.trf.xlu0
    %v943 = vpop.trf.xlu0
    %v944 = vpop.trf.xlu0
    %v945 = vpop.trf.xlu0
    %v946 = vpop.trf.xlu0
    %v947 = vlaneseq
    %v948 = vshrl.u32 %v947, 7
    %v949 = vsub.s32 0, %v948
    %v950 = vrot.slane %v931, %v949
    %v951 = vmul.f32 %v358, %v950
    %953 = vset.pattern.permute.xlu0 0
    %954 = vperm.xlu0 %953, %v376
    %v955 = vpop.permute.xlu0 %954
    %v957 = vmul.f32 %v955, %v951
    %958 = vst [vmem:[#allocation9] sm:$0xff] %v957
    %959 = vadd.xlane.f32.xlu0 %v957
    %v960 = vpop.xlane.xlu0 %959
    %v961 = vrot.slane %v957, 4
    %v962 = vadd.f32 %v957, %v961
    %v963 = vrot.slane %v962, 2
    %v964 = vadd.f32 %v962, %v963
    %v965 = vrot.slane %v964, 1
    %v966 = vadd.f32 %v964, %v965
    %967 = vmatprep.subr.mxu0 0.0
    %968 = vmatpush1.msra.mxu0 %v59
    %969 = vmatprep.subr.mxu0 0.0
    %970 = vmatpush1.msra.mxu0 %v58
    %971 = vmatprep.subr.mxu0 0.0
    %972 = vmatpush1.msra.mxu0 %v57
    %973 = vmatprep.subr.mxu0 0.0
    %974 = vmatpush1.msra.mxu0 %v56
    %975 = vmatprep.subr.mxu0 0.0
    %976 = vmatpush1.msra.mxu0 %v55
    %977 = vmatprep.subr.mxu0 0.0
    %978 = vmatpush1.msra.mxu0 %v54
    %979 = vmatprep.subr.mxu0 0.0
    %980 = vmatpush1.msra.mxu0 %v53
    %981 = vmatprep.subr.mxu0 0.0
    %982 = vmatpush1.msra.mxu0 %v52
    %983 = vmatprep.subr.mxu0 0.0
    %984 = vmatpush1.msra.mxu0 %v51
    %985 = vmatprep.subr.mxu0 0.0
    %986 = vmatpush1.msra.mxu0 %v50
    %987 = vmatprep.subr.mxu0 0.0
    %988 = vmatpush1.msra.mxu0 %v49
    %989 = vmatprep.subr.mxu0 0.0
    %990 = vmatpush1.msra.mxu0 %v48
    %991 = vmatprep.subr.mxu0 0.0
    %992 = vmatpush1.msra.mxu0 %v47
    %993 = vmatprep.subr.mxu0 0.0
    %994 = vmatpush1.msra.mxu0 %v46
    %995 = vmatprep.subr.mxu0 0.0
    %996 = vmatpush1.msra.mxu0 %v45
    %997 = vmatprep.subr.mxu0 0.0
    %998 = vmatpush1.msra.mxu0 %v44
    %999 = vmatprep.subr.mxu0 0.0
    %1000 = vmatpush2.msra.mxu0 0.0
    %1001 = vmatprep.subr.mxu0 0.0
    %1002 = vmatpush2.msra.mxu0 0.0
    %1003 = vmatprep.subr.mxu0 0.0
    %1004 = vmatpush2.msra.mxu0 0.0
    %1005 = vmatprep.subr.mxu0 0.0
    %1006 = vmatpush2.msra.mxu0 0.0
    %1007 = vmatprep.subr.mxu0 0.0
    %1008 = vmatpush2.msra.mxu0 0.0
    %1009 = vmatprep.subr.mxu0 0.0
    %1010 = vmatpush2.msra.mxu0 0.0
    %1011 = vmatprep.subr.mxu0 0.0
    %1012 = vmatpush2.msra.mxu0 0.0
    %1013 = vmatprep.subr.mxu0 0.0
    %1014 = vmatpush2.msra.mxu0 0.0
    %1015 = vmatprep.subr.mxu0 0.0
    %1016 = vmatpush2.msra.mxu0 0.0
    %1017 = vmatprep.subr.mxu0 0.0
    %1018 = vmatpush2.msra.mxu0 0.0
    %1019 = vmatprep.subr.mxu0 0.0
    %1020 = vmatpush2.msra.mxu0 0.0
    %1021 = vmatprep.subr.mxu0 0.0
    %1022 = vmatpush2.msra.mxu0 0.0
    %1023 = vmatprep.subr.mxu0 0.0
    %1024 = vmatpush2.msra.mxu0 0.0
    %1025 = vmatprep.subr.mxu0 0.0
    %1026 = vmatpush2.msra.mxu0 0.0
    %1027 = vmatprep.subr.mxu0 0.0
    %1028 = vmatpush2.msra.mxu0 0.0
    %1029 = vmatprep.subr.mxu0 0.0
    %1030 = vmatpush2.msra.mxu0 0.0
    %1031 = vmatprep.mubr.f32.mxu0 0.0
    %1032 = vmatmul.mubr.f32.gmra.mxu0 %v957
    %v1033 = vpop.f32.mrf.mxu0
    %v1034 = vadd.f32 0.0, %v1033
    %v1035 = vpop.f32.mrf.mxu0
    %1036 = vdwg.mxu0
    %v1037 = vmul.f32 %v95, %v960
    %vm1038 = vcmask 7168
    %v1039 = vsel %vm1038, %v1037, 0.0
    %1040 = vadd.xlane.f32.xlu0 %v1039
    %v1041 = vpop.xlane.xlu0 %1040
    %v1042 = vrot.slane %v1041, 4
    %v1043 = vadd.f32 %v1041, %v1042
    %v1044 = vrot.slane %v1043, 2
    %v1045 = vadd.f32 %v1043, %v1044
    %v1046 = vrot.slane %v1045, 1
    %v1047 = vadd.f32 %v1045, %v1046
    %s1048 = vtos %v1047
    %v1049 = vmul.f32 %v230, %v966
    %vm1050 = vcmask 1040384
    %v1051 = vsel %vm1050, %v1049, 0.0
    %1052 = vadd.xlane.f32.xlu0 %v1051
    %v1053 = vpop.xlane.xlu0 %1052
    %v1054 = vrot.slane %v1053, 4
    %v1055 = vadd.f32 %v1053, %v1054
    %v1056 = vrot.slane %v1055, 2
    %v1057 = vadd.f32 %v1055, %v1056
    %v1058 = vrot.slane %v1057, 1
    %v1059 = vadd.f32 %v1057, %v1058
    %s1060 = vtos %v1059
    %s1061 = sadd.f32 %s1048, %s1060
    %v1062 = vmul.f32 %v43, %v1034
    %1063 = vadd.xlane.f32.xlu0 %v1062
    %v1064 = vpop.xlane.xlu0 %1063
    %v1065 = vrot.slane %v1064, 4
    %v1066 = vadd.f32 %v1064, %v1065
    %v1067 = vrot.slane %v1066, 2
    %v1068 = vadd.f32 %v1066, %v1067
    %v1069 = vrot.slane %v1068, 1
    %v1070 = vadd.f32 %v1068, %v1069
    %s1071 = vtos %v1070
    %s1072 = smul.f32 %s1071, 2.0
    %s1073 = ssub.f32 %s1061, %s1072
    %s1074 = scalar_lea.smem [#allocation8], 0
    %1075 = sst [smem:[%s1074]] %s1073
    // Predicated region
    $region32: #{tpu_custom_call.1} parent=1 // pred_check
      _
    $region33: #{tpu_custom_call.1} parent=1 // pred_check_branch
      %1077 = sbr.rel (0) target = $region35
    $region34: #{tpu_custom_call.1} parent=1 // pred_region
      %s1079 = ssub.s32 16, 16
      %1080 = vsyncadd [#allocation5], %s1079
      %1083 = dma.smem_to_hbm [#allocation8], 16, %s2, [#allocation5]
    $region35: #{tpu_custom_call.1} parent=1 // pred_fallthru
      _
    // Predicated region
    $region36: #{tpu_custom_call.1} parent=1 // pred_check
      _
    $region37: #{tpu_custom_call.1} parent=1 // pred_check_branch
      %1085 = sbr.rel (0) target = $region39
    $region38: #{tpu_custom_call.1} parent=1 // pred_region
      %s1087 = ssub.s32 128, 128
      %1088 = vsyncadd [#allocation4], %s1087
      %s1090 = sshll.u32 [#allocation9], 4
      %s1091 = int_to_ptr.vmem [resolvable:$true] %s1090
      %1093 = dma.vmem_to_hbm [thread:$0]  %s1091, 128, %s3, [#allocation4]
    $region39: #{tpu_custom_call.1} parent=1 // pred_fallthru
      _
    // Predicated region
    $region40: #{tpu_custom_call.1} parent=1 // pred_check
      _
    $region41: #{tpu_custom_call.1} parent=1 // pred_check_branch
      %1095 = sbr.rel (0) target = $region43
    $region42: #{tpu_custom_call.1} parent=1 // pred_region
      %1096 = dma.done [#allocation5], 16
    $region43: #{tpu_custom_call.1} parent=1 // pred_fallthru
      _
    // Predicated region
    $region44: #{tpu_custom_call.1} parent=1 // pred_check
      _
    $region45: #{tpu_custom_call.1} parent=1 // pred_check_branch
      %1098 = sbr.rel (0) target = $region47
    $region46: #{tpu_custom_call.1} parent=1 // pred_region
      %1099 = dma.done [#allocation4], 128
    $region47: #{tpu_custom_call.1} parent=1 // pred_fallthru
      _
    %1100 = sfence
    %1101 = vsyncpa [#allocation3], 1
    %1102 = vsyncpa [#allocation7], 1
    %1103 = vsyncpa [#allocation4], 1
    %1104 = vsyncpa [#allocation5], 1

</llo_original>
